<compile_context>
chip_gen: v7x
topology: tpu7x:2x2x1
jax: 0.10.0
libtpu: 0.0.40
codegen_flags: <defaults>
</compile_context>

<pallas_src>
import jax
import jax.numpy as jnp
from jax.experimental import pallas as pl
from jax.experimental.pallas import tpu as pltpu


def _round_up(n, m):
    return ((n + m - 1) // m) * m


def _mlp_kernel(x_ref, w1_ref, b1_ref, w2_ref, b2_ref, w3_ref, b3_ref, o_ref):
    # Layer 0: (TM, CODE) bf16 @ (CODE, HID) bf16 -> f32 accumulate (MXU).
    h = jnp.dot(x_ref[...], w1_ref[...], preferred_element_type=jnp.float32)
    h = jnp.maximum(h + b1_ref[...], 0.0)              # bias + ReLU in f32 (VPU)

    # Layer 1: (TM, HID) bf16 @ (HID, HID) bf16 -> f32 accumulate (MXU).
    h = jnp.dot(h.astype(jnp.bfloat16), w2_ref[...],
                preferred_element_type=jnp.float32)
    h = jnp.maximum(h + b2_ref[...], 0.0)

    # Layer 2: Linear(HID -> 1).  A (TM,HID)x(HID,1) matmul would use one of
    # 256 MXU columns and still pay the systolic push + FIFO drain; do it as a
    # VPU multiply + lane reduction instead (spare VALU/XLU slots).
    logit = jnp.sum(h * w3_ref[...], axis=-1, keepdims=True) + b3_ref[...]
    o_ref[...] = logit.astype(o_ref.dtype)


def code_discriminator(x, params, *, tile_m=512):
    """Forward pass of CodeDiscriminator.  x: (B, code_size) float32 -> (B, 1) f32."""
    w1, b1, w2, b2, w3_row, b3 = params
    B, code = x.shape
    hid = w1.shape[1]

    # Batch tile: multiple of 16 (bf16 sublane packing), capped at tile_m.
    tm = min(tile_m, _round_up(B, 16))
    b_pad = _round_up(B, tm)
    if b_pad != B:
        x = jnp.pad(x, ((0, b_pad - B), (0, 0)))
    grid = (b_pad // tm,)

    # bf16 on the MXU / DMA path; biases and the final reduction row stay f32.
    x_bf = x.astype(jnp.bfloat16)
    w1_bf = w1.astype(jnp.bfloat16)
    w2_bf = w2.astype(jnp.bfloat16)

    # Constant index_map -> operand stays resident in VMEM across grid steps.
    resident = lambda a: pl.BlockSpec(a.shape, lambda i: (0,) * a.ndim)

    flops = 2 * b_pad * (code * hid + hid * hid + hid)
    bytes_accessed = (x_bf.size * 2 + w1_bf.size * 2 + w2_bf.size * 2
                      + (b1.size + b2.size + w3_row.size + b3.size) * 4
                      + b_pad * 4)

    out = pl.pallas_call(
        _mlp_kernel,
        out_shape=jax.ShapeDtypeStruct((b_pad, 1), jnp.float32),
        grid=grid,
        in_specs=[
            pl.BlockSpec((tm, code), lambda i: (i, 0)),   # batch tile of x
            resident(w1_bf), resident(b1),                # layer 0 params
            resident(w2_bf), resident(b2),                # layer 1 params
            resident(w3_row), resident(b3),               # layer 2 params
        ],
        out_specs=pl.BlockSpec((tm, 1), lambda i: (i, 0)),
        compiler_params=pltpu.CompilerParams(
            dimension_semantics=("parallel",)),           # v7x: shard over 2 TCs
        cost_estimate=pl.CostEstimate(flops=flops, transcendentals=0,
                                      bytes_accessed=bytes_accessed),
    )(x_bf, w1_bf, b1, w2_bf, b2, w3_row, b3)
    return out[:B]


def init_params(key, code_size, num_units):
    """Deterministic synthetic parameters (nn.Linear shapes, pre-transposed to
    (in_features, out_features); final layer kept as a (1, num_units) row for
    the VPU reduction)."""
    k = jax.random.split(key, 6)
    s = 0.05
    w1 = s * jax.random.normal(k[0], (code_size, num_units), jnp.float32)
    b1 = s * jax.random.normal(k[1], (1, num_units), jnp.float32)
    w2 = s * jax.random.normal(k[2], (num_units, num_units), jnp.float32)
    b2 = s * jax.random.normal(k[3], (1, num_units), jnp.float32)
    w3 = s * jax.random.normal(k[4], (1, num_units), jnp.float32)  # row form of (num_units, 1)
    b3 = s * jax.random.normal(k[5], (1, 1), jnp.float32)
    return (w1, b1, w2, b2, w3, b3)


def _reference(x, params):
    """Pure-JAX reference; emulates the kernel's bf16 MXU inputs (f32 accumulate)."""
    w1, b1, w2, b2, w3_row, b3 = params
    bf = lambda a: a.astype(jnp.bfloat16).astype(jnp.float32)
    h = jnp.maximum(bf(x) @ bf(w1) + b1, 0.0)
    h = jnp.maximum(bf(h) @ bf(w2) + b2, 0.0)
    return jnp.sum(h * w3_row, axis=-1, keepdims=True) + b3


if __name__ == "__main__":
    # Small shapes consistent with the module: code_size=50 (module default),
    # num_units=128 (scaled-down hidden), batch=64.
    B, CODE, HID = 64, 50, 128

    key = jax.random.PRNGKey(0)
    kx, kp = jax.random.split(key)
    x = jax.random.normal(kx, (B, CODE), jnp.float32)
    params = init_params(kp, CODE, HID)

    out = jax.block_until_ready(code_discriminator(x, params))
    ref = _reference(x, params)

    assert out.shape == (B, 1)
    assert jnp.allclose(out, ref, atol=2e-3, rtol=1e-2), "mismatch vs reference"

    print("KERNEL_OK")
</pallas_src>

<mosaic_0001>
module attributes {stable_mosaic.version = 11 : i64} {
  func.func @_mlp_kernel(%arg0: i32, %arg1: memref<64x50xbf16, #tpu.memory_space<vmem>>, %arg2: memref<50x128xbf16, #tpu.memory_space<vmem>>, %arg3: memref<1x128xf32, #tpu.memory_space<vmem>>, %arg4: memref<128x128xbf16, #tpu.memory_space<vmem>>, %arg5: memref<1x128xf32, #tpu.memory_space<vmem>>, %arg6: memref<1x128xf32, #tpu.memory_space<vmem>>, %arg7: memref<1x1xf32, #tpu.memory_space<vmem>>, %arg8: memref<64x1xf32, #tpu.memory_space<vmem>>) attributes {dimension_semantics = [#tpu.dimension_semantics<parallel>], iteration_bounds = array<i64: 1>, scalar_prefetch = 0 : i64, scratch_operands = 0 : i64, tpu.core_type = #tpu.core_type<tc>, window_params = [{transform_indices = @transform_0, window_bounds = array<i64: 64, 50>}, {pipeline_mode = #tpu.pipeline_mode<synchronous>, transform_indices = @transform_1, window_bounds = array<i64: 50, 128>}, {pipeline_mode = #tpu.pipeline_mode<synchronous>, transform_indices = @transform_2, window_bounds = array<i64: 1, 128>}, {pipeline_mode = #tpu.pipeline_mode<synchronous>, transform_indices = @transform_3, window_bounds = array<i64: 128, 128>}, {pipeline_mode = #tpu.pipeline_mode<synchronous>, transform_indices = @transform_4, window_bounds = array<i64: 1, 128>}, {pipeline_mode = #tpu.pipeline_mode<synchronous>, transform_indices = @transform_5, window_bounds = array<i64: 1, 128>}, {pipeline_mode = #tpu.pipeline_mode<synchronous>, transform_indices = @transform_6, window_bounds = array<i64: 1, 1>}, {transform_indices = @transform_7, window_bounds = array<i64: 64, 1>}]} {
    %c0 = arith.constant 0 : index
    %c0_0 = arith.constant 0 : index
    %0 = vector.load %arg1[%c0, %c0_0] : memref<64x50xbf16, #tpu.memory_space<vmem>>, vector<64x50xbf16>
    %c0_1 = arith.constant 0 : index
    %c0_2 = arith.constant 0 : index
    %1 = vector.load %arg2[%c0_1, %c0_2] : memref<50x128xbf16, #tpu.memory_space<vmem>>, vector<50x128xbf16>
    %cst = arith.constant dense<0.000000e+00> : vector<64x128xf32>
    %2 = tpu.matmul %0, %1, %cst {dimension_numbers = #tpu.dot_dimension_numbers<[1], [0], [0], [1], [0, 0, 1, 1], [], []>} : vector<64x50xbf16>, vector<50x128xbf16>, vector<64x128xf32> -> vector<64x128xf32>
    %c0_3 = arith.constant 0 : index
    %c0_4 = arith.constant 0 : index
    %3 = vector.load %arg3[%c0_3, %c0_4] : memref<1x128xf32, #tpu.memory_space<vmem>>, vector<1x128xf32>
    %4 = vector.broadcast %3 : vector<1x128xf32> to vector<64x128xf32>
    %5 = arith.addf %2, %4 : vector<64x128xf32>
    %cst_5 = arith.constant 0.000000e+00 : f32
    %6 = vector.broadcast %cst_5 : f32 to vector<64x128xf32>
    %7 = arith.maximumf %5, %6 : vector<64x128xf32>
    %8 = arith.truncf %7 : vector<64x128xf32> to vector<64x128xbf16>
    %c0_6 = arith.constant 0 : index
    %c0_7 = arith.constant 0 : index
    %9 = vector.load %arg4[%c0_6, %c0_7] : memref<128x128xbf16, #tpu.memory_space<vmem>>, vector<128x128xbf16>
    %cst_8 = arith.constant dense<0.000000e+00> : vector<64x128xf32>
    %10 = tpu.matmul %8, %9, %cst_8 {dimension_numbers = #tpu.dot_dimension_numbers<[1], [0], [0], [1], [0, 0, 1, 1], [], []>} : vector<64x128xbf16>, vector<128x128xbf16>, vector<64x128xf32> -> vector<64x128xf32>
    %c0_9 = arith.constant 0 : index
    %c0_10 = arith.constant 0 : index
    %11 = vector.load %arg5[%c0_9, %c0_10] : memref<1x128xf32, #tpu.memory_space<vmem>>, vector<1x128xf32>
    %12 = vector.broadcast %11 : vector<1x128xf32> to vector<64x128xf32>
    %13 = arith.addf %10, %12 : vector<64x128xf32>
    %cst_11 = arith.constant 0.000000e+00 : f32
    %14 = vector.broadcast %cst_11 : f32 to vector<64x128xf32>
    %15 = arith.maximumf %13, %14 : vector<64x128xf32>
    %c0_12 = arith.constant 0 : index
    %c0_13 = arith.constant 0 : index
    %16 = vector.load %arg6[%c0_12, %c0_13] : memref<1x128xf32, #tpu.memory_space<vmem>>, vector<1x128xf32>
    %17 = vector.broadcast %16 : vector<1x128xf32> to vector<64x128xf32>
    %18 = arith.mulf %15, %17 : vector<64x128xf32>
    %cst_14 = arith.constant dense<0.000000e+00> : vector<64xf32>
    %19 = vector.multi_reduction <add>, %18, %cst_14 [1] : vector<64x128xf32> to vector<64xf32>
    %20 = vector.shape_cast %19 : vector<64xf32> to vector<64x1xf32>
    %c0_15 = arith.constant 0 : index
    %c0_16 = arith.constant 0 : index
    %21 = vector.load %arg7[%c0_15, %c0_16] : memref<1x1xf32, #tpu.memory_space<vmem>>, vector<1x1xf32>
    %22 = vector.broadcast %21 : vector<1x1xf32> to vector<64x1xf32>
    %23 = arith.addf %20, %22 : vector<64x1xf32>
    %c0_17 = arith.constant 0 : index
    %c0_18 = arith.constant 0 : index
    %24 = vector.load %arg8[%c0_17, %c0_18] : memref<64x1xf32, #tpu.memory_space<vmem>>, vector<64x1xf32>
    tpu.vector_store %arg8[%c0_17, %c0_18], %23 {strides = array<i32>} : memref<64x1xf32, #tpu.memory_space<vmem>>, vector<64x1xf32>,
    return
  }
  func.func @transform_0(%arg0: i32) -> (i32, i32) {
    %c0_i32 = arith.constant 0 : i32
    %c0_i32_0 = arith.constant 0 : i32
    return %arg0, %c0_i32 : i32, i32
  }
  func.func @transform_1(%arg0: i32) -> (i32, i32) {
    %c0_i32 = arith.constant 0 : i32
    %c0_i32_0 = arith.constant 0 : i32
    %c0_i32_1 = arith.constant 0 : i32
    return %c0_i32, %c0_i32_0 : i32, i32
  }
  func.func @transform_2(%arg0: i32) -> (i32, i32) {
    %c0_i32 = arith.constant 0 : i32
    %c0_i32_0 = arith.constant 0 : i32
    %c0_i32_1 = arith.constant 0 : i32
    return %c0_i32, %c0_i32_0 : i32, i32
  }
  func.func @transform_3(%arg0: i32) -> (i32, i32) {
    %c0_i32 = arith.constant 0 : i32
    %c0_i32_0 = arith.constant 0 : i32
    %c0_i32_1 = arith.constant 0 : i32
    return %c0_i32, %c0_i32_0 : i32, i32
  }
  func.func @transform_4(%arg0: i32) -> (i32, i32) {
    %c0_i32 = arith.constant 0 : i32
    %c0_i32_0 = arith.constant 0 : i32
    %c0_i32_1 = arith.constant 0 : i32
    return %c0_i32, %c0_i32_0 : i32, i32
  }
  func.func @transform_5(%arg0: i32) -> (i32, i32) {
    %c0_i32 = arith.constant 0 : i32
    %c0_i32_0 = arith.constant 0 : i32
    %c0_i32_1 = arith.constant 0 : i32
    return %c0_i32, %c0_i32_0 : i32, i32
  }
  func.func @transform_6(%arg0: i32) -> (i32, i32) {
    %c0_i32 = arith.constant 0 : i32
    %c0_i32_0 = arith.constant 0 : i32
    %c0_i32_1 = arith.constant 0 : i32
    return %c0_i32, %c0_i32_0 : i32, i32
  }
  func.func @transform_7(%arg0: i32) -> (i32, i32) {
    %c0_i32 = arith.constant 0 : i32
    %c0_i32_0 = arith.constant 0 : i32
    return %arg0, %c0_i32 : i32, i32
  }
}

</mosaic_0001>

<llo_original>
// kernel: tpu_custom_call.1
$region0: #{tpu_custom_call.1}
  #allocation0 [shape = 'u32[]', space=smem, size = 0x4, offset = 0x4, fixed_abs, tag = 'smem constant byte address 0x4 - core index']
  #allocation1 [shape = 'u32[144,128]{1,0:T(1,128)}', space=vmem, size = 0x12000, scoped, tag = 'internal scratch']
  #allocation2 [shape = 'f32[1,1]{1,0:T(1,128)S(1)}', space=vmem, size = 0x200, scoped, tag = 'scoped memory for tpu_custom_call.1']
  %s0 = inlined_call_operand.vmem [shape: bf16[64,50], index: 0, kind: input, shape index: {}]
  %s1 = inlined_call_operand.hbm [shape: bf16[50,128], index: 1, kind: input, shape index: {}]
  %s2 = inlined_call_operand.vmem [shape: f32[1,128], index: 2, kind: input, shape index: {}]
  %s3 = inlined_call_operand.vmem [shape: bf16[128,128], index: 3, kind: input, shape index: {}]
  %s4 = inlined_call_operand.vmem [shape: f32[1,128], index: 4, kind: input, shape index: {}]
  %s5 = inlined_call_operand.vmem [shape: f32[1,128], index: 5, kind: input, shape index: {}]
  %s6 = inlined_call_operand.<no memory space> [shape: f32[1,1], index: 6, kind: input, shape index: {}]
  %s7 = inlined_call_operand.vmem [shape: f32[64,1], index: 7, kind: output, shape index: {}]
  %s8 = sld [smem:[#allocation0]]
  $region42: #{tpu_custom_call.1} parent=0
    _
  %s10 = ssub.s32 1, %s8
  %s11 = scalar_select 0, %s10, %s8
  %v12 = vstv %s6
  %13 = vst [vmem:[#allocation2] sm:$0x1] %v12
  $region1: #{tpu_custom_call.1} parent=0
    #allocation3 [shape = 'u8[14336]{0}', space=vmem, size = 0x3800, scoped, tag = 'input window, operand 1, single buffered']
    #allocation4 [shape = 's32[1]{0}', space=sflag, size = 0x4, scoped, tag = 'scoped memory for tpu_custom_call.1']
    %14 = vsyncpa [#allocation4], 0
    // Predicated region
    $region2: #{tpu_custom_call.1} parent=1 // pred_check
      _
    $region3: #{tpu_custom_call.1} parent=1 // pred_check_branch
      %16 = sbr.rel (0) target = $region5
    $region4: #{tpu_custom_call.1} parent=1 // pred_region
      _
    $region5: #{tpu_custom_call.1} parent=1 // pred_fallthru
      _
    // Predicated region
    $region6: #{tpu_custom_call.1} parent=1 // pred_check
      _
    $region7: #{tpu_custom_call.1} parent=1 // pred_check_branch
      %18 = sbr.rel (0) target = $region9
    $region8: #{tpu_custom_call.1} parent=1 // pred_region
      %s20 = ssub.s32 448, 448
      %21 = vsyncadd [#allocation4], %s20
      %s22 = sshll.u32 [#allocation3], 4
      %s23 = int_to_ptr.vmem [resolvable:$true] %s22
      %28 = dma.hbm_to_vmem [thread:$0]  %s1, 448, %s23, [#allocation4], 64, 64, 4
    $region9: #{tpu_custom_call.1} parent=1 // pred_fallthru
      _
    // Predicated region
    $region10: #{tpu_custom_call.1} parent=1 // pred_check
      _
    $region11: #{tpu_custom_call.1} parent=1 // pred_check_branch
      %30 = sbr.rel (0) target = $region13
    $region12: #{tpu_custom_call.1} parent=1 // pred_region
      _
    $region13: #{tpu_custom_call.1} parent=1 // pred_fallthru
      _
    // Predicated region
    $region14: #{tpu_custom_call.1} parent=1 // pred_check
      _
    $region15: #{tpu_custom_call.1} parent=1 // pred_check_branch
      %32 = sbr.rel (0) target = $region17
    $region16: #{tpu_custom_call.1} parent=1 // pred_region
      _
    $region17: #{tpu_custom_call.1} parent=1 // pred_fallthru
      _
    // Predicated region
    $region18: #{tpu_custom_call.1} parent=1 // pred_check
      _
    $region19: #{tpu_custom_call.1} parent=1 // pred_check_branch
      %34 = sbr.rel (0) target = $region21
    $region20: #{tpu_custom_call.1} parent=1 // pred_region
      _
    $region21: #{tpu_custom_call.1} parent=1 // pred_fallthru
      _
    // Predicated region
    $region22: #{tpu_custom_call.1} parent=1 // pred_check
      _
    $region23: #{tpu_custom_call.1} parent=1 // pred_check_branch
      %36 = sbr.rel (0) target = $region25
    $region24: #{tpu_custom_call.1} parent=1 // pred_region
      _
    $region25: #{tpu_custom_call.1} parent=1 // pred_fallthru
      _
    // Predicated region
    $region26: #{tpu_custom_call.1} parent=1 // pred_check
      _
    $region27: #{tpu_custom_call.1} parent=1 // pred_check_branch
      %38 = sbr.rel (0) target = $region29
    $region28: #{tpu_custom_call.1} parent=1 // pred_region
      _
    $region29: #{tpu_custom_call.1} parent=1 // pred_fallthru
      _
    // Predicated region
    $region30: #{tpu_custom_call.1} parent=1 // pred_check
      _
    $region31: #{tpu_custom_call.1} parent=1 // pred_check_branch
      %40 = sbr.rel (0) target = $region33
    $region32: #{tpu_custom_call.1} parent=1 // pred_region
      %41 = dma.done [#allocation4], 448
    $region33: #{tpu_custom_call.1} parent=1 // pred_fallthru
      _
    %v43 = vld [vmem:[%s0] sm:$0xf]
    %v44 = vld [vmem:[%s0 + $0x4] sm:$0xf]
    %v45 = vld [vmem:[%s0 + $0x8] sm:$0xf]
    %v46 = vld [vmem:[%s0 + $0xc] sm:$0xf]
    %v47 = vld [vmem:[%s0 + $0x10] sm:$0xf]
    %v48 = vld [vmem:[%s0 + $0x14] sm:$0xf]
    %v49 = vld [vmem:[%s0 + $0x18] sm:$0xf]
    %v50 = vld [vmem:[%s0 + $0x1c] sm:$0xf]
    %v51 = vld [vmem:[#allocation3] sm:$0xf]
    %v52 = vld [vmem:[#allocation3 + $0x4] sm:$0xf]
    %v53 = vld [vmem:[#allocation3 + $0x8] sm:$0xf]
    %v54 = vld [vmem:[#allocation3 + $0xc] sm:$0xf]
    %v55 = vld [vmem:[#allocation3 + $0x10] sm:$0xf]
    %v56 = vld [vmem:[#allocation3 + $0x14] sm:$0xf]
    %v57 = vld [vmem:[#allocation3 + $0x18] sm:$0x1]
    %v58 = vld [vmem:[%s2] sm:$0x1]
    %v60 = vlaneseq
    %v61 = vshrl.u32 %v60, 7
    %v62 = vsub.s32 0, %v61
    %v63 = vrot.slane %v58, %v62
    %v73 = vunpack.c.l.b16 %v43
    %v74 = vunpack.c.l.b16 %v44
    %v75 = vunpack.c.l.b16 %v45
    %v76 = vunpack.c.l.b16 %v46
    %v77 = vunpack.c.l.b16 %v47
    %v78 = vunpack.c.l.b16 %v48
    %v79 = vunpack.c.l.b16 %v49
    %v80 = vunpack.c.l.b16 %v50
    %v81 = vpack.c.b16 %v74, %v73
    %v82 = vpack.c.b16 %v76, %v75
    %v83 = vpack.c.b16 %v78, %v77
    %v84 = vpack.c.b16 %v80, %v79
    %v92 = vunpack.c.l.b16 %v51
    %v93 = vunpack.c.l.b16 %v52
    %v94 = vunpack.c.l.b16 %v53
    %v95 = vunpack.c.l.b16 %v54
    %v96 = vunpack.c.l.b16 %v55
    %v97 = vunpack.c.l.b16 %v56
    %v98 = vunpack.c.l.b16 %v57
    %v99 = vpack.c.b16 %v93, %v92
    %v100 = vpack.c.b16 %v95, %v94
    %v101 = vpack.c.b16 %v97, %v96
    %v102 = vpack.c.b16 %v98, %v98
    %vm106 = vcmask 408576
    %v108 = vsel %vm106, %v81, 0
    %v111 = vsel %vm106, %v82, 0
    %v114 = vsel %vm106, %v83, 0
    %v117 = vsel %vm106, %v84, 0
    %vm119 = vcmask 1040384
    %v121 = vsel %vm119, %v102, 0
    %123 = vmatprep.subr.bf16.mxu0 0
    %124 = vmatpush1.bf16.msra.mxu0 %v99
    %125 = vmatprep.subr.bf16.mxu0 0
    %126 = vmatpush1.bf16.msra.mxu0 %v100
    %127 = vmatprep.subr.bf16.mxu0 0
    %128 = vmatpush1.bf16.msra.mxu0 %v101
    %129 = vmatprep.subr.bf16.mxu0 0
    %130 = vmatpush1.bf16.msra.mxu0 %v121
    %131 = vmatprep.subr.bf16.mxu0 0
    %132 = vmatpush1.bf16.msra.mxu0 0
    %133 = vmatprep.subr.bf16.mxu0 0
    %134 = vmatpush1.bf16.msra.mxu0 0
    %135 = vmatprep.subr.bf16.mxu0 0
    %136 = vmatpush1.bf16.msra.mxu0 0
    %137 = vmatprep.subr.bf16.mxu0 0
    %138 = vmatpush1.bf16.msra.mxu0 0
    %139 = vmatprep.subr.bf16.mxu0 0
    %140 = vmatpush1.bf16.msra.mxu0 0
    %141 = vmatprep.subr.bf16.mxu0 0
    %142 = vmatpush1.bf16.msra.mxu0 0
    %143 = vmatprep.subr.bf16.mxu0 0
    %144 = vmatpush1.bf16.msra.mxu0 0
    %145 = vmatprep.subr.bf16.mxu0 0
    %146 = vmatpush1.bf16.msra.mxu0 0
    %147 = vmatprep.subr.bf16.mxu0 0
    %148 = vmatpush1.bf16.msra.mxu0 0
    %149 = vmatprep.subr.bf16.mxu0 0
    %150 = vmatpush1.bf16.msra.mxu0 0
    %151 = vmatprep.subr.bf16.mxu0 0
    %152 = vmatpush1.bf16.msra.mxu0 0
    %153 = vmatprep.subr.bf16.mxu0 0
    %154 = vmatpush1.bf16.msra.mxu0 0
    %155 = vmatprep.mubr.bf16.mxu0 0
    %156 = vmatmul.mubr.bf16.gmra.mrb[0].mxu0 %v108
    %v157 = vpop.f32.mrb[0].mxu0
    %v158 = vadd.f32 %v63, %v157
    %v159 = vpop.f32.mrb[0].mxu0
    %v160 = vpop.f32.mrb[0].mxu0
    %v161 = vadd.f32 %v63, %v160
    %v162 = vpop.f32.mrb[0].mxu0
    %163 = vmatprep.mubr.bf16.mxu0 0
    %164 = vmatmul.mubr.bf16.gmra.mrb[0].mxu0 %v111
    %v165 = vpop.f32.mrb[0].mxu0
    %v166 = vadd.f32 %v63, %v165
    %v167 = vpop.f32.mrb[0].mxu0
    %v168 = vpop.f32.mrb[0].mxu0
    %v169 = vadd.f32 %v63, %v168
    %v170 = vpop.f32.mrb[0].mxu0
    %171 = vmatprep.mubr.bf16.mxu0 0
    %172 = vmatmul.mubr.bf16.gmra.mrb[0].mxu0 %v114
    %v173 = vpop.f32.mrb[0].mxu0
    %v174 = vadd.f32 %v63, %v173
    %v175 = vpop.f32.mrb[0].mxu0
    %v176 = vpop.f32.mrb[0].mxu0
    %v177 = vadd.f32 %v63, %v176
    %v178 = vpop.f32.mrb[0].mxu0
    %179 = vmatprep.mubr.bf16.mxu0 0
    %180 = vmatmul.mubr.bf16.gmra.mrb[0].mxu0 %v117
    %v181 = vpop.f32.mrb[0].mxu0
    %v182 = vadd.f32 %v63, %v181
    %v183 = vpop.f32.mrb[0].mxu0
    %v184 = vpop.f32.mrb[0].mxu0
    %v185 = vadd.f32 %v63, %v184
    %v186 = vpop.f32.mrb[0].mxu0
    %187 = vdwg.mxu0
    %v188 = vmax.f32 %v158, 0.0
    %v189 = vmax.f32 %v161, 0.0
    %v190 = vmax.f32 %v166, 0.0
    %v191 = vmax.f32 %v169, 0.0
    %v192 = vmax.f32 %v174, 0.0
    %v193 = vmax.f32 %v177, 0.0
    %v194 = vmax.f32 %v182, 0.0
    %v195 = vmax.f32 %v185, 0.0
    %v196 = vpack.c.bf16 %v189, %v188
    %v197 = vpack.c.bf16 %v191, %v190
    %v198 = vpack.c.bf16 %v193, %v192
    %v199 = vpack.c.bf16 %v195, %v194
    %v200 = vld [vmem:[%s3] sm:$0xf]
    %v201 = vld [vmem:[%s3 + $0x4] sm:$0xf]
    %v202 = vld [vmem:[%s3 + $0x8] sm:$0xf]
    %v203 = vld [vmem:[%s3 + $0xc] sm:$0xf]
    %v204 = vld [vmem:[%s3 + $0x10] sm:$0xf]
    %v205 = vld [vmem:[%s3 + $0x14] sm:$0xf]
    %v206 = vld [vmem:[%s3 + $0x18] sm:$0xf]
    %v207 = vld [vmem:[%s3 + $0x1c] sm:$0xf]
    %v208 = vld [vmem:[%s3 + $0x20] sm:$0xf]
    %v209 = vld [vmem:[%s3 + $0x24] sm:$0xf]
    %v210 = vld [vmem:[%s3 + $0x28] sm:$0xf]
    %v211 = vld [vmem:[%s3 + $0x2c] sm:$0xf]
    %v212 = vld [vmem:[%s3 + $0x30] sm:$0xf]
    %v213 = vld [vmem:[%s3 + $0x34] sm:$0xf]
    %v214 = vld [vmem:[%s3 + $0x38] sm:$0xf]
    %v215 = vld [vmem:[%s3 + $0x3c] sm:$0xf]
    %v216 = vld [vmem:[%s4] sm:$0x1]
    %v218 = vlaneseq
    %v219 = vshrl.u32 %v218, 7
    %v220 = vsub.s32 0, %v219
    %v221 = vrot.slane %v216, %v220
    %v239 = vunpack.c.l.b16 %v200
    %v240 = vunpack.c.l.b16 %v201
    %v241 = vunpack.c.l.b16 %v202
    %v242 = vunpack.c.l.b16 %v203
    %v243 = vunpack.c.l.b16 %v204
    %v244 = vunpack.c.l.b16 %v205
    %v245 = vunpack.c.l.b16 %v206
    %v246 = vunpack.c.l.b16 %v207
    %v247 = vunpack.c.l.b16 %v208
    %v248 = vunpack.c.l.b16 %v209
    %v249 = vunpack.c.l.b16 %v210
    %v250 = vunpack.c.l.b16 %v211
    %v251 = vunpack.c.l.b16 %v212
    %v252 = vunpack.c.l.b16 %v213
    %v253 = vunpack.c.l.b16 %v214
    %v254 = vunpack.c.l.b16 %v215
    %v255 = vpack.c.b16 %v240, %v239
    %v256 = vpack.c.b16 %v242, %v241
    %v257 = vpack.c.b16 %v244, %v243
    %v258 = vpack.c.b16 %v246, %v245
    %v259 = vpack.c.b16 %v248, %v247
    %v260 = vpack.c.b16 %v250, %v249
    %v261 = vpack.c.b16 %v252, %v251
    %v262 = vpack.c.b16 %v254, %v253
    %271 = vmatprep.subr.bf16.mxu0 0
    %272 = vmatpush1.bf16.msra.mxu0 %v255
    %273 = vmatprep.subr.bf16.mxu0 0
    %274 = vmatpush1.bf16.msra.mxu0 %v256
    %275 = vmatprep.subr.bf16.mxu0 0
    %276 = vmatpush1.bf16.msra.mxu0 %v257
    %277 = vmatprep.subr.bf16.mxu0 0
    %278 = vmatpush1.bf16.msra.mxu0 %v258
    %279 = vmatprep.subr.bf16.mxu0 0
    %280 = vmatpush1.bf16.msra.mxu0 %v259
    %281 = vmatprep.subr.bf16.mxu0 0
    %282 = vmatpush1.bf16.msra.mxu0 %v260
    %283 = vmatprep.subr.bf16.mxu0 0
    %284 = vmatpush1.bf16.msra.mxu0 %v261
    %285 = vmatprep.subr.bf16.mxu0 0
    %286 = vmatpush1.bf16.msra.mxu0 %v262
    %287 = vmatprep.subr.bf16.mxu0 0
    %288 = vmatpush1.bf16.msra.mxu0 0
    %289 = vmatprep.subr.bf16.mxu0 0
    %290 = vmatpush1.bf16.msra.mxu0 0
    %291 = vmatprep.subr.bf16.mxu0 0
    %292 = vmatpush1.bf16.msra.mxu0 0
    %293 = vmatprep.subr.bf16.mxu0 0
    %294 = vmatpush1.bf16.msra.mxu0 0
    %295 = vmatprep.subr.bf16.mxu0 0
    %296 = vmatpush1.bf16.msra.mxu0 0
    %297 = vmatprep.subr.bf16.mxu0 0
    %298 = vmatpush1.bf16.msra.mxu0 0
    %299 = vmatprep.subr.bf16.mxu0 0
    %300 = vmatpush1.bf16.msra.mxu0 0
    %301 = vmatprep.subr.bf16.mxu0 0
    %302 = vmatpush1.bf16.msra.mxu0 0
    %303 = vmatprep.mubr.bf16.mxu0 0
    %304 = vmatmul.mubr.bf16.gmra.mrb[0].mxu0 %v196
    %v305 = vpop.f32.mrb[0].mxu0
    %v306 = vadd.f32 %v221, %v305
    %v307 = vpop.f32.mrb[0].mxu0
    %v308 = vpop.f32.mrb[0].mxu0
    %v309 = vadd.f32 %v221, %v308
    %v310 = vpop.f32.mrb[0].mxu0
    %311 = vmatprep.mubr.bf16.mxu0 0
    %312 = vmatmul.mubr.bf16.gmra.mrb[0].mxu0 %v197
    %v313 = vpop.f32.mrb[0].mxu0
    %v314 = vadd.f32 %v221, %v313
    %v315 = vpop.f32.mrb[0].mxu0
    %v316 = vpop.f32.mrb[0].mxu0
    %v317 = vadd.f32 %v221, %v316
    %v318 = vpop.f32.mrb[0].mxu0
    %319 = vmatprep.mubr.bf16.mxu0 0
    %320 = vmatmul.mubr.bf16.gmra.mrb[0].mxu0 %v198
    %v321 = vpop.f32.mrb[0].mxu0
    %v322 = vadd.f32 %v221, %v321
    %v323 = vpop.f32.mrb[0].mxu0
    %v324 = vpop.f32.mrb[0].mxu0
    %v325 = vadd.f32 %v221, %v324
    %v326 = vpop.f32.mrb[0].mxu0
    %327 = vmatprep.mubr.bf16.mxu0 0
    %328 = vmatmul.mubr.bf16.gmra.mrb[0].mxu0 %v199
    %v329 = vpop.f32.mrb[0].mxu0
    %v330 = vadd.f32 %v221, %v329
    %v331 = vpop.f32.mrb[0].mxu0
    %v332 = vpop.f32.mrb[0].mxu0
    %v333 = vadd.f32 %v221, %v332
    %v334 = vpop.f32.mrb[0].mxu0
    %335 = vdwg.mxu0
    %v336 = vmax.f32 %v306, 0.0
    %v337 = vmax.f32 %v309, 0.0
    %v338 = vmax.f32 %v314, 0.0
    %v339 = vmax.f32 %v317, 0.0
    %v340 = vmax.f32 %v322, 0.0
    %v341 = vmax.f32 %v325, 0.0
    %v342 = vmax.f32 %v330, 0.0
    %v343 = vmax.f32 %v333, 0.0
    %v344 = vld [vmem:[%s5] sm:$0x1]
    %v346 = vlaneseq
    %v347 = vshrl.u32 %v346, 7
    %v348 = vsub.s32 0, %v347
    %v349 = vrot.slane %v344, %v348
    %v351 = vmul.f32 %v336, %v349
    %v352 = vmul.f32 %v337, %v349
    %v353 = vmul.f32 %v338, %v349
    %v354 = vmul.f32 %v339, %v349
    %v355 = vmul.f32 %v340, %v349
    %v356 = vmul.f32 %v341, %v349
    %v357 = vmul.f32 %v342, %v349
    %v358 = vmul.f32 %v343, %v349
    %359 = vadd.xlane.f32.xlu0 %v351
    %v360 = vpop.xlane.xlu0 %359
    %361 = vadd.xlane.f32.xlu0 %v352
    %v362 = vpop.xlane.xlu0 %361
    %363 = vadd.xlane.f32.xlu0 %v353
    %v364 = vpop.xlane.xlu0 %363
    %365 = vadd.xlane.f32.xlu0 %v354
    %v366 = vpop.xlane.xlu0 %365
    %367 = vadd.xlane.f32.xlu0 %v355
    %v368 = vpop.xlane.xlu0 %367
    %369 = vadd.xlane.f32.xlu0 %v356
    %v370 = vpop.xlane.xlu0 %369
    %371 = vadd.xlane.f32.xlu0 %v357
    %v372 = vpop.xlane.xlu0 %371
    %373 = vadd.xlane.f32.xlu0 %v358
    %v374 = vpop.xlane.xlu0 %373
    %v375 = vld [vmem:[#allocation2] sm:$0x1]
    %v377 = vlaneseq
    %v378 = vshrl.u32 %v377, 7
    %v379 = vsub.s32 0, %v378
    %v380 = vrot.slane %v375, %v379
    %v382 = vadd.f32 %v360, %v380
    %v383 = vadd.f32 %v362, %v380
    %v384 = vadd.f32 %v364, %v380
    %v385 = vadd.f32 %v366, %v380
    %v386 = vadd.f32 %v368, %v380
    %v387 = vadd.f32 %v370, %v380
    %v388 = vadd.f32 %v372, %v380
    %v389 = vadd.f32 %v374, %v380
    %vm390 = vcmask 7168
    %391 = vst.msk [vmem:[%s7] sm:$0xff] %vm390, %v382
    %392 = vst.msk [vmem:[%s7 + $0x8] sm:$0xff] %vm390, %v383
    %393 = vst.msk [vmem:[%s7 + $0x10] sm:$0xff] %vm390, %v384
    %394 = vst.msk [vmem:[%s7 + $0x18] sm:$0xff] %vm390, %v385
    %395 = vst.msk [vmem:[%s7 + $0x20] sm:$0xff] %vm390, %v386
    %396 = vst.msk [vmem:[%s7 + $0x28] sm:$0xff] %vm390, %v387
    %397 = vst.msk [vmem:[%s7 + $0x30] sm:$0xff] %vm390, %v388
    %398 = vst.msk [vmem:[%s7 + $0x38] sm:$0xff] %vm390, %v389
    // Predicated region
    $region34: #{tpu_custom_call.1} parent=1 // pred_check
      _
    $region35: #{tpu_custom_call.1} parent=1 // pred_check_branch
      %400 = sbr.rel (0) target = $region37
    $region36: #{tpu_custom_call.1} parent=1 // pred_region
      _
    $region37: #{tpu_custom_call.1} parent=1 // pred_fallthru
      _
    // Predicated region
    $region38: #{tpu_custom_call.1} parent=1 // pred_check
      _
    $region39: #{tpu_custom_call.1} parent=1 // pred_check_branch
      %402 = sbr.rel (0) target = $region41
    $region40: #{tpu_custom_call.1} parent=1 // pred_region
      _
    $region41: #{tpu_custom_call.1} parent=1 // pred_fallthru
      _
    %403 = vsyncpa [#allocation4], 1

</llo_original>
